<compile_context>
chip_gen: v7x
topology: tpu7x:2x2x1
jax: 0.10.0
libtpu: 0.0.40
codegen_flags: <defaults>
</compile_context>

<pallas_src>
import jax
import jax.numpy as jnp
from jax.experimental import pallas as pl
from jax.experimental.pallas import tpu as pltpu


class GradientReverseModule:
    """Python-side port of GradientReverseModule: forward is identity on x; the
    scheduler only updates the scalar coeff used by the (not implemented) backward."""

    def __init__(self, scheduler):
        self.scheduler = scheduler
        self.global_step = 0.0
        self.coeff = 0.0

    def forward(self, x):
        self.coeff = self.scheduler(self.global_step)
        self.global_step += 1.0
        return x  # identity in forward; -coeff applies to gradients only


def _adv_net_kernel(x_ref, w1_ref, b1_ref, w2_ref, b2_ref, w3_ref, b3_ref, o_ref):
    # x : (TB, F) bf16     w1: (F, H) bf16   b1: (1, H) f32
    #                      w2: (H, H) bf16   b2: (1, H) f32
    #                      w3: (1, H) f32    b3: (1, 1) f32
    # ad_layer1 + ReLU (dropout1 = identity in eval): bf16 MXU, f32 accumulate.
    h1 = jnp.dot(x_ref[...], w1_ref[...], preferred_element_type=jnp.float32)
    h1 = jnp.maximum(h1 + b1_ref[...], 0.0)

    # ad_layer2 + ReLU (dropout2 = identity in eval).
    h2 = jnp.dot(h1.astype(jnp.bfloat16), w2_ref[...],
                 preferred_element_type=jnp.float32)
    h2 = jnp.maximum(h2 + b2_ref[...], 0.0)

    # ad_layer3 + sigmoid: out_features == 1, so an MXU matmul would burn a full
    # pass for a single output column -- use the VPU multiply + cross-lane reduce.
    logits = jnp.sum(h2 * w3_ref[...], axis=-1, keepdims=True) + b3_ref[...]
    o_ref[...] = jax.nn.sigmoid(logits).astype(o_ref.dtype)


def _pick_tile_b(B, F, H, budget_bytes=8 << 20):
    """Largest batch tile that (a) is a multiple of 8, (b) divides B, (c) keeps the
    double-buffered per-step working set under `budget_bytes` (safe for v7x's
    smaller VMEM), and (d) leaves >=4 grid steps for pipelining / megacore when B
    is large enough."""
    per_row = 2 * (F * 2) + 2 * H * 4 + 8   # 2x bf16 x buffers + f32 h1/h2 + out
    cap = max(8, budget_bytes // max(per_row, 1))
    target = min(cap, 1024, B if B < 32 else max(8, B // 4))
    t = (target // 8) * 8
    while t >= 8:
        if B % t == 0:
            return t
        t -= 8
    return B  # tiny / awkward B: fall back to a single full-batch tile


def sc_adversarial_network_forward(x, params, *, tile_b=None):
    """x: (B, in_feature) float32. params: dict of w1,b1,w2,b2,w3,b3 (w stored (in,out))."""
    B, F = x.shape
    H = params["w1"].shape[1]

    if tile_b is None:
        tile_b = _pick_tile_b(B, F, H)
    assert B % tile_b == 0, "tile_b must divide the batch"
    assert tile_b % 8 == 0 or tile_b == B, \
        "tile_b must be a multiple of 8 (sublane constraint) or equal to B"

    # Stream activations and the two big weight matrices as bf16; keep biases and
    # the tiny w3 row in f32 for the VPU epilogue.
    x_bf = x.astype(jnp.bfloat16)
    w1 = params["w1"].astype(jnp.bfloat16)
    w2 = params["w2"].astype(jnp.bfloat16)
    b1 = params["b1"].reshape(1, H).astype(jnp.float32)
    b2 = params["b2"].reshape(1, H).astype(jnp.float32)
    w3 = params["w3"].reshape(1, H).astype(jnp.float32)   # row vector for VPU path
    b3 = params["b3"].reshape(1, 1).astype(jnp.float32)

    grid = (B // tile_b,)
    cost = pl.CostEstimate(
        flops=2 * B * (F * H + H * H + H),
        transcendentals=B,  # one exp per sigmoid
        bytes_accessed=(x_bf.size * 2 + w1.size * 2 + w2.size * 2
                        + (b1.size + b2.size + w3.size + b3.size) * 4
                        + B * 4),
    )

    return pl.pallas_call(
        _adv_net_kernel,
        out_shape=jax.ShapeDtypeStruct((B, 1), jnp.float32),
        grid_spec=pltpu.PrefetchScalarGridSpec(
            num_scalar_prefetch=0,
            grid=grid,
            in_specs=[
                pl.BlockSpec((tile_b, F), lambda i: (i, 0)),   # x tile (pipelined)
                pl.BlockSpec((F, H), lambda i: (0, 0)),        # w1 (resident)
                pl.BlockSpec((1, H), lambda i: (0, 0)),        # b1
                pl.BlockSpec((H, H), lambda i: (0, 0)),        # w2
                pl.BlockSpec((1, H), lambda i: (0, 0)),        # b2
                pl.BlockSpec((1, H), lambda i: (0, 0)),        # w3 (as a row)
                pl.BlockSpec((1, 1), lambda i: (0, 0)),        # b3
            ],
            out_specs=pl.BlockSpec((tile_b, 1), lambda i: (i, 0)),
        ),
        compiler_params=pltpu.CompilerParams(
            dimension_semantics=("parallel",),
        ),
        cost_estimate=cost,
    )(x_bf, w1, b1, w2, b2, w3, b3)


def init_params(key, in_feature, hidden_size):
    """Deterministic init mirroring init_weights: xavier_normal_ weights, zero bias."""
    k1, k2, k3 = jax.random.split(key, 3)

    def xavier_normal(k, fan_in, fan_out):
        std = jnp.sqrt(2.0 / (fan_in + fan_out))
        return (std * jax.random.normal(k, (fan_in, fan_out))).astype(jnp.float32)

    return {
        "w1": xavier_normal(k1, in_feature, hidden_size),
        "b1": jnp.zeros((hidden_size,), jnp.float32),
        "w2": xavier_normal(k2, hidden_size, hidden_size),
        "b2": jnp.zeros((hidden_size,), jnp.float32),
        "w3": xavier_normal(k3, hidden_size, 1),
        "b3": jnp.zeros((1,), jnp.float32),
    }


def reference_forward_mixed(x, params):
    """Pure-JAX reference matching the kernel's precision (bf16 streams, f32 accumulate)."""
    xb = x.astype(jnp.bfloat16)
    w1 = params["w1"].astype(jnp.bfloat16)
    w2 = params["w2"].astype(jnp.bfloat16)
    h1 = jnp.maximum(
        jnp.dot(xb, w1, preferred_element_type=jnp.float32) + params["b1"], 0.0)
    h2 = jnp.maximum(
        jnp.dot(h1.astype(jnp.bfloat16), w2, preferred_element_type=jnp.float32)
        + params["b2"], 0.0)
    y = (jnp.sum(h2 * params["w3"].reshape(1, -1), axis=-1, keepdims=True)
         + params["b3"].reshape(1, 1))
    return jax.nn.sigmoid(y)


def reference_forward_f32(x, params):
    h1 = jnp.maximum(x @ params["w1"] + params["b1"], 0.0)
    h2 = jnp.maximum(h1 @ params["w2"] + params["b2"], 0.0)
    y = h2 @ params["w3"] + params["b3"]
    return jax.nn.sigmoid(y)


if __name__ == "__main__":
    key = jax.random.PRNGKey(0)
    kx, kp = jax.random.split(key)

    B, in_feature, hidden_size = 512, 64, 32
    x = jax.random.normal(kx, (B, in_feature), dtype=jnp.float32)
    params = init_params(kp, in_feature, hidden_size)

    # GradientReverseModule: identity in forward, coeff bookkeeping only.
    grl = GradientReverseModule(lambda step: min(1.0, step / 1000.0))
    x_grl = grl.forward(x)

    out = sc_adversarial_network_forward(x_grl, params)
    out = jax.block_until_ready(out)

    ref = reference_forward_mixed(x, params)
    ref_f32 = reference_forward_f32(x, params)
    assert out.shape == (B, 1)
    assert jnp.allclose(out, ref, atol=1e-3, rtol=1e-3)
    assert jnp.allclose(out, ref_f32, atol=3e-2, rtol=3e-2)

    print("KERNEL_OK")
</pallas_src>

<mosaic_0001>
module attributes {stable_mosaic.version = 11 : i64} {
  func.func @_adv_net_kernel(%arg0: i32, %arg1: memref<128x64xbf16, #tpu.memory_space<vmem>>, %arg2: memref<64x32xbf16, #tpu.memory_space<vmem>>, %arg3: memref<1x32xf32, #tpu.memory_space<vmem>>, %arg4: memref<32x32xbf16, #tpu.memory_space<vmem>>, %arg5: memref<1x32xf32, #tpu.memory_space<vmem>>, %arg6: memref<1x32xf32, #tpu.memory_space<vmem>>, %arg7: memref<1x1xf32, #tpu.memory_space<vmem>>, %arg8: memref<128x1xf32, #tpu.memory_space<vmem>>) attributes {dimension_semantics = [#tpu.dimension_semantics<parallel>], iteration_bounds = array<i64: 4>, scalar_prefetch = 0 : i64, scratch_operands = 0 : i64, tpu.core_type = #tpu.core_type<tc>, window_params = [{transform_indices = @transform_0, window_bounds = array<i64: 128, 64>}, {pipeline_mode = #tpu.pipeline_mode<synchronous>, transform_indices = @transform_1, window_bounds = array<i64: 64, 32>}, {pipeline_mode = #tpu.pipeline_mode<synchronous>, transform_indices = @transform_2, window_bounds = array<i64: 1, 32>}, {pipeline_mode = #tpu.pipeline_mode<synchronous>, transform_indices = @transform_3, window_bounds = array<i64: 32, 32>}, {pipeline_mode = #tpu.pipeline_mode<synchronous>, transform_indices = @transform_4, window_bounds = array<i64: 1, 32>}, {pipeline_mode = #tpu.pipeline_mode<synchronous>, transform_indices = @transform_5, window_bounds = array<i64: 1, 32>}, {pipeline_mode = #tpu.pipeline_mode<synchronous>, transform_indices = @transform_6, window_bounds = array<i64: 1, 1>}, {transform_indices = @transform_7, window_bounds = array<i64: 128, 1>}]} {
    %c0 = arith.constant 0 : index
    %c0_0 = arith.constant 0 : index
    %0 = vector.load %arg1[%c0, %c0_0] : memref<128x64xbf16, #tpu.memory_space<vmem>>, vector<128x64xbf16>
    %c0_1 = arith.constant 0 : index
    %c0_2 = arith.constant 0 : index
    %1 = vector.load %arg2[%c0_1, %c0_2] : memref<64x32xbf16, #tpu.memory_space<vmem>>, vector<64x32xbf16>
    %cst = arith.constant dense<0.000000e+00> : vector<128x32xf32>
    %2 = tpu.matmul %0, %1, %cst {dimension_numbers = #tpu.dot_dimension_numbers<[1], [0], [0], [1], [0, 0, 1, 1], [], []>} : vector<128x64xbf16>, vector<64x32xbf16>, vector<128x32xf32> -> vector<128x32xf32>
    %c0_3 = arith.constant 0 : index
    %c0_4 = arith.constant 0 : index
    %3 = vector.load %arg3[%c0_3, %c0_4] : memref<1x32xf32, #tpu.memory_space<vmem>>, vector<1x32xf32>
    %4 = vector.broadcast %3 : vector<1x32xf32> to vector<128x32xf32>
    %5 = arith.addf %2, %4 : vector<128x32xf32>
    %cst_5 = arith.constant 0.000000e+00 : f32
    %6 = vector.broadcast %cst_5 : f32 to vector<128x32xf32>
    %7 = arith.maximumf %5, %6 : vector<128x32xf32>
    %8 = arith.truncf %7 : vector<128x32xf32> to vector<128x32xbf16>
    %c0_6 = arith.constant 0 : index
    %c0_7 = arith.constant 0 : index
    %9 = vector.load %arg4[%c0_6, %c0_7] : memref<32x32xbf16, #tpu.memory_space<vmem>>, vector<32x32xbf16>
    %cst_8 = arith.constant dense<0.000000e+00> : vector<128x32xf32>
    %10 = tpu.matmul %8, %9, %cst_8 {dimension_numbers = #tpu.dot_dimension_numbers<[1], [0], [0], [1], [0, 0, 1, 1], [], []>} : vector<128x32xbf16>, vector<32x32xbf16>, vector<128x32xf32> -> vector<128x32xf32>
    %c0_9 = arith.constant 0 : index
    %c0_10 = arith.constant 0 : index
    %11 = vector.load %arg5[%c0_9, %c0_10] : memref<1x32xf32, #tpu.memory_space<vmem>>, vector<1x32xf32>
    %12 = vector.broadcast %11 : vector<1x32xf32> to vector<128x32xf32>
    %13 = arith.addf %10, %12 : vector<128x32xf32>
    %cst_11 = arith.constant 0.000000e+00 : f32
    %14 = vector.broadcast %cst_11 : f32 to vector<128x32xf32>
    %15 = arith.maximumf %13, %14 : vector<128x32xf32>
    %c0_12 = arith.constant 0 : index
    %c0_13 = arith.constant 0 : index
    %16 = vector.load %arg6[%c0_12, %c0_13] : memref<1x32xf32, #tpu.memory_space<vmem>>, vector<1x32xf32>
    %17 = vector.broadcast %16 : vector<1x32xf32> to vector<128x32xf32>
    %18 = arith.mulf %15, %17 : vector<128x32xf32>
    %cst_14 = arith.constant dense<0.000000e+00> : vector<128xf32>
    %19 = vector.multi_reduction <add>, %18, %cst_14 [1] : vector<128x32xf32> to vector<128xf32>
    %20 = vector.shape_cast %19 : vector<128xf32> to vector<128x1xf32>
    %c0_15 = arith.constant 0 : index
    %c0_16 = arith.constant 0 : index
    %21 = vector.load %arg7[%c0_15, %c0_16] : memref<1x1xf32, #tpu.memory_space<vmem>>, vector<1x1xf32>
    %22 = vector.broadcast %21 : vector<1x1xf32> to vector<128x1xf32>
    %23 = arith.addf %20, %22 : vector<128x1xf32>
    %24 = arith.negf %23 : vector<128x1xf32>
    %25 = math.exp %24 : vector<128x1xf32>
    %cst_17 = arith.constant 1.000000e+00 : f32
    %26 = vector.broadcast %cst_17 : f32 to vector<128x1xf32>
    %27 = arith.addf %26, %25 : vector<128x1xf32>
    %28 = arith.divf %26, %27 : vector<128x1xf32>
    %c0_18 = arith.constant 0 : index
    %c0_19 = arith.constant 0 : index
    %29 = vector.load %arg8[%c0_18, %c0_19] : memref<128x1xf32, #tpu.memory_space<vmem>>, vector<128x1xf32>
    tpu.vector_store %arg8[%c0_18, %c0_19], %28 {strides = array<i32>} : memref<128x1xf32, #tpu.memory_space<vmem>>, vector<128x1xf32>,
    return
  }
  func.func @transform_0(%arg0: i32) -> (i32, i32) {
    %c0_i32 = arith.constant 0 : i32
    %c0_i32_0 = arith.constant 0 : i32
    return %arg0, %c0_i32 : i32, i32
  }
  func.func @transform_1(%arg0: i32) -> (i32, i32) {
    %c0_i32 = arith.constant 0 : i32
    %c0_i32_0 = arith.constant 0 : i32
    %c0_i32_1 = arith.constant 0 : i32
    return %c0_i32, %c0_i32_0 : i32, i32
  }
  func.func @transform_2(%arg0: i32) -> (i32, i32) {
    %c0_i32 = arith.constant 0 : i32
    %c0_i32_0 = arith.constant 0 : i32
    %c0_i32_1 = arith.constant 0 : i32
    return %c0_i32, %c0_i32_0 : i32, i32
  }
  func.func @transform_3(%arg0: i32) -> (i32, i32) {
    %c0_i32 = arith.constant 0 : i32
    %c0_i32_0 = arith.constant 0 : i32
    %c0_i32_1 = arith.constant 0 : i32
    return %c0_i32, %c0_i32_0 : i32, i32
  }
  func.func @transform_4(%arg0: i32) -> (i32, i32) {
    %c0_i32 = arith.constant 0 : i32
    %c0_i32_0 = arith.constant 0 : i32
    %c0_i32_1 = arith.constant 0 : i32
    return %c0_i32, %c0_i32_0 : i32, i32
  }
  func.func @transform_5(%arg0: i32) -> (i32, i32) {
    %c0_i32 = arith.constant 0 : i32
    %c0_i32_0 = arith.constant 0 : i32
    %c0_i32_1 = arith.constant 0 : i32
    return %c0_i32, %c0_i32_0 : i32, i32
  }
  func.func @transform_6(%arg0: i32) -> (i32, i32) {
    %c0_i32 = arith.constant 0 : i32
    %c0_i32_0 = arith.constant 0 : i32
    %c0_i32_1 = arith.constant 0 : i32
    return %c0_i32, %c0_i32_0 : i32, i32
  }
  func.func @transform_7(%arg0: i32) -> (i32, i32) {
    %c0_i32 = arith.constant 0 : i32
    %c0_i32_0 = arith.constant 0 : i32
    return %arg0, %c0_i32 : i32, i32
  }
}

</mosaic_0001>

<llo_original>
// kernel: tpu_custom_call.1
$region0: #{tpu_custom_call.1}
  #allocation0 [shape = 'u32[]', space=smem, size = 0x4, offset = 0x4, fixed_abs, tag = 'smem constant byte address 0x4 - core index']
  #allocation1 [shape = 'u32[144,128]{1,0:T(1,128)}', space=vmem, size = 0x12000, scoped, tag = 'internal scratch']
  #allocation2 [shape = 'f32[1,1]{1,0:T(1,128)S(1)}', space=vmem, size = 0x200, scoped, tag = 'scoped memory for tpu_custom_call.1']
  %s0 = inlined_call_operand.vmem [shape: bf16[512,64], index: 0, kind: input, shape index: {}]
  %s1 = inlined_call_operand.vmem [shape: bf16[64,32], index: 1, kind: input, shape index: {}]
  %s2 = inlined_call_operand.vmem [shape: f32[1,32], index: 2, kind: input, shape index: {}]
  %s3 = inlined_call_operand.vmem [shape: bf16[32,32], index: 3, kind: input, shape index: {}]
  %s4 = inlined_call_operand.vmem [shape: f32[1,32], index: 4, kind: input, shape index: {}]
  %s5 = inlined_call_operand.vmem [shape: f32[1,32], index: 5, kind: input, shape index: {}]
  %s6 = inlined_call_operand.<no memory space> [shape: f32[1,1], index: 6, kind: input, shape index: {}]
  %s7 = inlined_call_operand.vmem [shape: f32[512,1], index: 7, kind: output, shape index: {}]
  %s8 = sld [smem:[#allocation0]]
  $region61: #{tpu_custom_call.1} parent=0
    _
  %s10 = ssub.s32 1, %s8
  %s11 = scalar_select 0, %s10, %s8
  %v12 = vstv %s6
  %13 = vst [vmem:[#allocation2] sm:$0x1] %v12
  loop: start=0, step=1, limit=6
  $region2: #{tpu_custom_call.1} parent=0 // loop_pre_header
    _
  $region3: #{tpu_custom_call.1} parent=0 // loop_header
    %s15 = sphi 0, %s19
    %p16 = scmp.ge.s32.totalorder %s15, 6
    %s25 = sphi 0, %s27
    %s28 = sphi 0, %s25
    %s29 = sphi 0, %s28
    %s45 = sphi 0, %s29
    %s49 = sphi 0, %s49
    %s51 = sphi 0, %s49
    %s52 = sphi 0, %s51
    %s66 = sphi 0, %s52
    %s70 = sphi 0, %s70
    %s72 = sphi 0, %s70
    %s73 = sphi 0, %s72
    %s87 = sphi 0, %s73
    %s91 = sphi 0, %s91
    %s93 = sphi 0, %s91
    %s94 = sphi 0, %s93
    %s108 = sphi 0, %s94
    %s112 = sphi 0, %s112
    %s114 = sphi 0, %s112
    %s115 = sphi 0, %s114
    %s129 = sphi 0, %s115
    %s133 = sphi 0, %s133
    %s135 = sphi 0, %s133
    %s136 = sphi 0, %s135
    %s150 = sphi 0, %s136
    %s154 = sphi 0, %s154
    %s156 = sphi 0, %s154
    %s157 = sphi 0, %s156
    %s171 = sphi 0, %s157
    %s177 = sphi 0, %s179
    %s180 = sphi 0, %s177
    %s181 = sphi 0, %s180
    %s197 = sphi 0, %s181
  $region4: #{tpu_custom_call.1} parent=0 // loop_header_branch
    %18 = sbr.rel (%p16) target = $region8
  $region5: #{tpu_custom_call.1} parent=0 // loop_body
    %s20 = ssub.s32 %s15, 1
    %s21 = ssub.s32 %s15, 2
    %s22 = sadd.s32 %s15, 1
    %s23 = ssub.s32 %s15, %s22
    %p24 = scmp.eq.s32.totalorder %s23, 0
    %s26 = sadd.s32 %s25, 1
    %s27 = scalar_select %p24, %s25, %s26
    %p30 = pneg %p24
    %p31 = scmp.eq.s32.totalorder %s15, 3
    %p32 = por %p30, %p31
    %p33 = scmp.ne.s32.totalorder %s25, %s28
    %p34 = scmp.eq.s32.totalorder %s15, 0
    %p35 = por %p33, %p34
    %p36 = scmp.ne.s32.totalorder %s25, %s28
    %p37 = scmp.eq.s32.totalorder %s20, 3
    %p38 = por %p36, %p37
    %p39 = scmp.ne.s32.totalorder %s28, %s29
    %p40 = scmp.eq.s32.totalorder %s20, 0
    %p41 = por %p39, %p40
    %p42 = scmp.ne.s32.totalorder %s28, %s29
    %p43 = scmp.eq.s32.totalorder %s21, 3
    %p44 = por %p42, %p43
    %p46 = scmp.ne.s32.totalorder %s29, %s45
    %p47 = scmp.eq.s32.totalorder %s21, 0
    %p48 = por %p46, %p47
    %s50 = sadd.s32 %s49, 1
    %p53 = scmp.eq.s32.totalorder %s15, 3
    %p54 = scmp.ne.s32.totalorder %s49, %s51
    %p55 = scmp.eq.s32.totalorder %s15, 0
    %p56 = por %p54, %p55
    %p57 = scmp.ne.s32.totalorder %s49, %s51
    %p58 = scmp.eq.s32.totalorder %s20, 3
    %p59 = por %p57, %p58
    %p60 = scmp.ne.s32.totalorder %s51, %s52
    %p61 = scmp.eq.s32.totalorder %s20, 0
    %p62 = por %p60, %p61
    %p63 = scmp.ne.s32.totalorder %s51, %s52
    %p64 = scmp.eq.s32.totalorder %s21, 3
    %p65 = por %p63, %p64
    %p67 = scmp.ne.s32.totalorder %s52, %s66
    %p68 = scmp.eq.s32.totalorder %s21, 0
    %p69 = por %p67, %p68
    %s71 = sadd.s32 %s70, 1
    %p74 = scmp.eq.s32.totalorder %s15, 3
    %p75 = scmp.ne.s32.totalorder %s70, %s72
    %p76 = scmp.eq.s32.totalorder %s15, 0
    %p77 = por %p75, %p76
    %p78 = scmp.ne.s32.totalorder %s70, %s72
    %p79 = scmp.eq.s32.totalorder %s20, 3
    %p80 = por %p78, %p79
    %p81 = scmp.ne.s32.totalorder %s72, %s73
    %p82 = scmp.eq.s32.totalorder %s20, 0
    %p83 = por %p81, %p82
    %p84 = scmp.ne.s32.totalorder %s72, %s73
    %p85 = scmp.eq.s32.totalorder %s21, 3
    %p86 = por %p84, %p85
    %p88 = scmp.ne.s32.totalorder %s73, %s87
    %p89 = scmp.eq.s32.totalorder %s21, 0
    %p90 = por %p88, %p89
    %s92 = sadd.s32 %s91, 1
    %p95 = scmp.eq.s32.totalorder %s15, 3
    %p96 = scmp.ne.s32.totalorder %s91, %s93
    %p97 = scmp.eq.s32.totalorder %s15, 0
    %p98 = por %p96, %p97
    %p99 = scmp.ne.s32.totalorder %s91, %s93
    %p100 = scmp.eq.s32.totalorder %s20, 3
    %p101 = por %p99, %p100
    %p102 = scmp.ne.s32.totalorder %s93, %s94
    %p103 = scmp.eq.s32.totalorder %s20, 0
    %p104 = por %p102, %p103
    %p105 = scmp.ne.s32.totalorder %s93, %s94
    %p106 = scmp.eq.s32.totalorder %s21, 3
    %p107 = por %p105, %p106
    %p109 = scmp.ne.s32.totalorder %s94, %s108
    %p110 = scmp.eq.s32.totalorder %s21, 0
    %p111 = por %p109, %p110
    %s113 = sadd.s32 %s112, 1
    %p116 = scmp.eq.s32.totalorder %s15, 3
    %p117 = scmp.ne.s32.totalorder %s112, %s114
    %p118 = scmp.eq.s32.totalorder %s15, 0
    %p119 = por %p117, %p118
    %p120 = scmp.ne.s32.totalorder %s112, %s114
    %p121 = scmp.eq.s32.totalorder %s20, 3
    %p122 = por %p120, %p121
    %p123 = scmp.ne.s32.totalorder %s114, %s115
    %p124 = scmp.eq.s32.totalorder %s20, 0
    %p125 = por %p123, %p124
    %p126 = scmp.ne.s32.totalorder %s114, %s115
    %p127 = scmp.eq.s32.totalorder %s21, 3
    %p128 = por %p126, %p127
    %p130 = scmp.ne.s32.totalorder %s115, %s129
    %p131 = scmp.eq.s32.totalorder %s21, 0
    %p132 = por %p130, %p131
    %s134 = sadd.s32 %s133, 1
    %p137 = scmp.eq.s32.totalorder %s15, 3
    %p138 = scmp.ne.s32.totalorder %s133, %s135
    %p139 = scmp.eq.s32.totalorder %s15, 0
    %p140 = por %p138, %p139
    %p141 = scmp.ne.s32.totalorder %s133, %s135
    %p142 = scmp.eq.s32.totalorder %s20, 3
    %p143 = por %p141, %p142
    %p144 = scmp.ne.s32.totalorder %s135, %s136
    %p145 = scmp.eq.s32.totalorder %s20, 0
    %p146 = por %p144, %p145
    %p147 = scmp.ne.s32.totalorder %s135, %s136
    %p148 = scmp.eq.s32.totalorder %s21, 3
    %p149 = por %p147, %p148
    %p151 = scmp.ne.s32.totalorder %s136, %s150
    %p152 = scmp.eq.s32.totalorder %s21, 0
    %p153 = por %p151, %p152
    %s155 = sadd.s32 %s154, 1
    %p158 = scmp.eq.s32.totalorder %s15, 3
    %p159 = scmp.ne.s32.totalorder %s154, %s156
    %p160 = scmp.eq.s32.totalorder %s15, 0
    %p161 = por %p159, %p160
    %p162 = scmp.ne.s32.totalorder %s154, %s156
    %p163 = scmp.eq.s32.totalorder %s20, 3
    %p164 = por %p162, %p163
    %p165 = scmp.ne.s32.totalorder %s156, %s157
    %p166 = scmp.eq.s32.totalorder %s20, 0
    %p167 = por %p165, %p166
    %p168 = scmp.ne.s32.totalorder %s156, %s157
    %p169 = scmp.eq.s32.totalorder %s21, 3
    %p170 = por %p168, %p169
    %p172 = scmp.ne.s32.totalorder %s157, %s171
    %p173 = scmp.eq.s32.totalorder %s21, 0
    %p174 = por %p172, %p173
    %s175 = ssub.s32 %s15, %s22
    %p176 = scmp.eq.s32.totalorder %s175, 0
    %s178 = sadd.s32 %s177, 1
    %s179 = scalar_select %p176, %s177, %s178
    %p182 = pneg %p176
    %p183 = scmp.eq.s32.totalorder %s15, 3
    %p184 = por %p182, %p183
    %p185 = scmp.ne.s32.totalorder %s177, %s180
    %p186 = scmp.eq.s32.totalorder %s15, 0
    %p187 = por %p185, %p186
    %p188 = scmp.ne.s32.totalorder %s177, %s180
    %p189 = scmp.eq.s32.totalorder %s20, 3
    %p190 = por %p188, %p189
    %p191 = scmp.ne.s32.totalorder %s180, %s181
    %p192 = scmp.eq.s32.totalorder %s20, 0
    %p193 = por %p191, %p192
    %p194 = scmp.ne.s32.totalorder %s180, %s181
    %p195 = scmp.eq.s32.totalorder %s21, 3
    %p196 = por %p194, %p195
    %p198 = scmp.ne.s32.totalorder %s181, %s197
    %p199 = scmp.eq.s32.totalorder %s21, 0
    %p200 = por %p198, %p199
    %p201 = scmp.le.s32.totalorder 1, %s15
    %p202 = scmp.lt.s32.totalorder %s15, 5
    %p203 = pnand %p201, %p202
    %p204 = pneg %p203
    // Predicated region
    $region9: #{tpu_custom_call.1} parent=5 // pred_check
      _
    $region10: #{tpu_custom_call.1} parent=5 // pred_check_branch
      %206 = sbr.rel (%p203) target = $region12
    $region11: #{tpu_custom_call.1} parent=5 // pred_region
      %s207 = ssub.s32 %s15, 1
      // Predicated region
      $region13: #{tpu_custom_call.1} parent=11 // pred_check
        %p208 = pneg %p62
      $region14: #{tpu_custom_call.1} parent=11 // pred_check_branch
        %210 = sbr.rel (%p208) target = $region16
      $region15: #{tpu_custom_call.1} parent=11 // pred_region
        _
      $region16: #{tpu_custom_call.1} parent=11 // pred_fallthru
        _
      // Predicated region
      $region17: #{tpu_custom_call.1} parent=11 // pred_check
        %p211 = pneg %p83
      $region18: #{tpu_custom_call.1} parent=11 // pred_check_branch
        %213 = sbr.rel (%p211) target = $region20
      $region19: #{tpu_custom_call.1} parent=11 // pred_region
        _
      $region20: #{tpu_custom_call.1} parent=11 // pred_fallthru
        _
      // Predicated region
      $region21: #{tpu_custom_call.1} parent=11 // pred_check
        %p214 = pneg %p104
      $region22: #{tpu_custom_call.1} parent=11 // pred_check_branch
        %216 = sbr.rel (%p214) target = $region24
      $region23: #{tpu_custom_call.1} parent=11 // pred_region
        _
      $region24: #{tpu_custom_call.1} parent=11 // pred_fallthru
        _
      // Predicated region
      $region25: #{tpu_custom_call.1} parent=11 // pred_check
        %p217 = pneg %p125
      $region26: #{tpu_custom_call.1} parent=11 // pred_check_branch
        %219 = sbr.rel (%p217) target = $region28
      $region27: #{tpu_custom_call.1} parent=11 // pred_region
        _
      $region28: #{tpu_custom_call.1} parent=11 // pred_fallthru
        _
      // Predicated region
      $region29: #{tpu_custom_call.1} parent=11 // pred_check
        %p220 = pneg %p146
      $region30: #{tpu_custom_call.1} parent=11 // pred_check_branch
        %222 = sbr.rel (%p220) target = $region32
      $region31: #{tpu_custom_call.1} parent=11 // pred_region
        _
      $region32: #{tpu_custom_call.1} parent=11 // pred_fallthru
        _
      // Predicated region
      $region33: #{tpu_custom_call.1} parent=11 // pred_check
        %p223 = pneg %p167
      $region34: #{tpu_custom_call.1} parent=11 // pred_check_branch
        %225 = sbr.rel (%p223) target = $region36
      $region35: #{tpu_custom_call.1} parent=11 // pred_region
        _
      $region36: #{tpu_custom_call.1} parent=11 // pred_fallthru
        _
    $region12: #{tpu_custom_call.1} parent=5 // pred_fallthru
      _
    %p226 = scmp.lt.s32.totalorder %s15, 4
    // Predicated region
    $region37: #{tpu_custom_call.1} parent=5 // pred_check
      %p227 = pneg %p226
    $region38: #{tpu_custom_call.1} parent=5 // pred_check_branch
      %229 = sbr.rel (%p227) target = $region40
    $region39: #{tpu_custom_call.1} parent=5 // pred_region
      // Predicated region
      $region41: #{tpu_custom_call.1} parent=39 // pred_check
        %p230 = pneg %p35
      $region42: #{tpu_custom_call.1} parent=39 // pred_check_branch
        %232 = sbr.rel (%p230) target = $region44
      $region43: #{tpu_custom_call.1} parent=39 // pred_region
        %s233 = smul.u32 16, %s15
        %p234 = scmp.lt.s32.totalorder %s233, 63
        %s235 = scalar_select %p234, %s233, 63
        %s236 = smul.addr %s235, 4
        %s237 = scalar_lea.vmem %s0, %s236
        %s238 = smul.u32 16, %s15
      $region44: #{tpu_custom_call.1} parent=39 // pred_fallthru
        _
    $region40: #{tpu_custom_call.1} parent=5 // pred_fallthru
      _
    %p239 = scmp.le.s32.totalorder 1, %s15
    %p240 = scmp.lt.s32.totalorder %s15, 5
    %p241 = pnand %p239, %p240
    %p242 = pneg %p241
    // Predicated region
    $region45: #{tpu_custom_call.1} parent=5 // pred_check
      _
    $region46: #{tpu_custom_call.1} parent=5 // pred_check_branch
      %244 = sbr.rel (%p241) target = $region48
    $region47: #{tpu_custom_call.1} parent=5 // pred_region
      %s245 = ssub.s32 %s15, 1
      %s246 = smul.u32 16, %s20
      %p247 = scmp.lt.s32.totalorder %s246, 63
      %s248 = scalar_select %p247, %s246, 63
      %s249 = smul.addr %s248, 4
      %s250 = scalar_lea.vmem %s0, %s249
      %p251 = pneg %p41
      %p252 = pneg %p38
      %p253 = pneg %p62
      %p254 = pneg %p59
      %p255 = pneg %p83
      %p256 = pneg %p80
      %p257 = pneg %p104
      %p258 = pneg %p101
      %p259 = pneg %p125
      %p260 = pneg %p122
      %p261 = pneg %p146
      %p262 = pneg %p143
      %p263 = pneg %p167
      %p264 = pneg %p164
      %p265 = pneg %p193
      %p266 = pneg %p190
      %s267 = smul.u32 16, %s20
      %p268 = scmp.lt.s32.totalorder %s267, 63
      %s269 = scalar_select %p268, %s267, 63
      %s270 = smul.addr %s269, 8
      %s271 = scalar_lea.vmem %s7, %s270
      %s272 = smul.u32 16, %s20
      %p273 = scmp.lt.s32.totalorder %s272, 63
      %s274 = scalar_select %p273, %s272, 63
      %s275 = smul.addr %s274, 4
      %s276 = scalar_lea.vmem %s0, %s275
      %s277 = smul.u32 16, %s20
      %s278 = smul.u32 16, %s20
      %p279 = scmp.lt.s32.totalorder %s278, 63
      %s280 = scalar_select %p279, %s278, 63
      %s281 = smul.addr %s280, 8
      %s282 = scalar_lea.vmem %s7, %s281
      %s283 = smul.u32 16, %s20
      %v285 = vld [vmem:[%s276] sm:$0xf]
      %v286 = vld [vmem:[%s276 + $0x4] sm:$0xf]
      %v287 = vld [vmem:[%s276 + $0x8] sm:$0xf]
      %v288 = vld [vmem:[%s276 + $0xc] sm:$0xf]
      %v289 = vld [vmem:[%s276 + $0x10] sm:$0xf]
      %v290 = vld [vmem:[%s276 + $0x14] sm:$0xf]
      %v291 = vld [vmem:[%s276 + $0x18] sm:$0xf]
      %v292 = vld [vmem:[%s276 + $0x1c] sm:$0xf]
      %v293 = vld [vmem:[%s276 + $0x20] sm:$0xf]
      %v294 = vld [vmem:[%s276 + $0x24] sm:$0xf]
      %v295 = vld [vmem:[%s276 + $0x28] sm:$0xf]
      %v296 = vld [vmem:[%s276 + $0x2c] sm:$0xf]
      %v297 = vld [vmem:[%s276 + $0x30] sm:$0xf]
      %v298 = vld [vmem:[%s276 + $0x34] sm:$0xf]
      %v299 = vld [vmem:[%s276 + $0x38] sm:$0xf]
      %v300 = vld [vmem:[%s276 + $0x3c] sm:$0xf]
      %v301 = vld [vmem:[%s1] sm:$0xf]
      %v302 = vld [vmem:[%s1 + $0x4] sm:$0xf]
      %v303 = vld [vmem:[%s1 + $0x8] sm:$0xf]
      %v304 = vld [vmem:[%s1 + $0xc] sm:$0xf]
      %v305 = vld [vmem:[%s1 + $0x10] sm:$0xf]
      %v306 = vld [vmem:[%s1 + $0x14] sm:$0xf]
      %v307 = vld [vmem:[%s1 + $0x18] sm:$0xf]
      %v308 = vld [vmem:[%s1 + $0x1c] sm:$0xf]
      %v309 = vld [vmem:[%s2] sm:$0x1]
      %v311 = vlaneseq
      %v312 = vshrl.u32 %v311, 7
      %v313 = vsub.s32 0, %v312
      %v314 = vrot.slane %v309, %v313
      %v332 = vunpack.c.l.b16 %v285
      %v333 = vunpack.c.l.b16 %v286
      %v334 = vunpack.c.l.b16 %v287
      %v335 = vunpack.c.l.b16 %v288
      %v336 = vunpack.c.l.b16 %v289
      %v337 = vunpack.c.l.b16 %v290
      %v338 = vunpack.c.l.b16 %v291
      %v339 = vunpack.c.l.b16 %v292
      %v340 = vunpack.c.l.b16 %v293
      %v341 = vunpack.c.l.b16 %v294
      %v342 = vunpack.c.l.b16 %v295
      %v343 = vunpack.c.l.b16 %v296
      %v344 = vunpack.c.l.b16 %v297
      %v345 = vunpack.c.l.b16 %v298
      %v346 = vunpack.c.l.b16 %v299
      %v347 = vunpack.c.l.b16 %v300
      %v348 = vpack.c.b16 %v333, %v332
      %v349 = vpack.c.b16 %v335, %v334
      %v350 = vpack.c.b16 %v337, %v336
      %v351 = vpack.c.b16 %v339, %v338
      %v352 = vpack.c.b16 %v341, %v340
      %v353 = vpack.c.b16 %v343, %v342
      %v354 = vpack.c.b16 %v345, %v344
      %v355 = vpack.c.b16 %v347, %v346
      %v364 = vunpack.c.l.b16 %v301
      %v365 = vunpack.c.l.b16 %v302
      %v366 = vunpack.c.l.b16 %v303
      %v367 = vunpack.c.l.b16 %v304
      %v368 = vunpack.c.l.b16 %v305
      %v369 = vunpack.c.l.b16 %v306
      %v370 = vunpack.c.l.b16 %v307
      %v371 = vunpack.c.l.b16 %v308
      %v372 = vpack.c.b16 %v365, %v364
      %v373 = vpack.c.b16 %v367, %v366
      %v374 = vpack.c.b16 %v369, %v368
      %v375 = vpack.c.b16 %v371, %v370
      %vm380 = vcmask 523264
      %v382 = vsel %vm380, %v348, 0
      %v385 = vsel %vm380, %v349, 0
      %v388 = vsel %vm380, %v350, 0
      %v391 = vsel %vm380, %v351, 0
      %v394 = vsel %vm380, %v352, 0
      %v397 = vsel %vm380, %v353, 0
      %v400 = vsel %vm380, %v354, 0
      %v403 = vsel %vm380, %v355, 0
      %405 = vmatprep.subr.bf16.mxu0 0
      %406 = vmatpush1.bf16.msra.mxu0 %v372
      %407 = vmatprep.subr.bf16.mxu0 0
      %408 = vmatpush1.bf16.msra.mxu0 %v373
      %409 = vmatprep.subr.bf16.mxu0 0
      %410 = vmatpush1.bf16.msra.mxu0 %v374
      %411 = vmatprep.subr.bf16.mxu0 0
      %412 = vmatpush1.bf16.msra.mxu0 %v375
      %413 = vmatprep.subr.bf16.mxu0 0
      %414 = vmatpush1.bf16.msra.mxu0 0
      %415 = vmatprep.subr.bf16.mxu0 0
      %416 = vmatpush1.bf16.msra.mxu0 0
      %417 = vmatprep.subr.bf16.mxu0 0
      %418 = vmatpush1.bf16.msra.mxu0 0
      %419 = vmatprep.subr.bf16.mxu0 0
      %420 = vmatpush1.bf16.msra.mxu0 0
      %421 = vmatprep.subr.bf16.mxu0 0
      %422 = vmatpush1.bf16.msra.mxu0 0
      %423 = vmatprep.subr.bf16.mxu0 0
      %424 = vmatpush1.bf16.msra.mxu0 0
      %425 = vmatprep.subr.bf16.mxu0 0
      %426 = vmatpush1.bf16.msra.mxu0 0
      %427 = vmatprep.subr.bf16.mxu0 0
      %428 = vmatpush1.bf16.msra.mxu0 0
      %429 = vmatprep.subr.bf16.mxu0 0
      %430 = vmatpush1.bf16.msra.mxu0 0
      %431 = vmatprep.subr.bf16.mxu0 0
      %432 = vmatpush1.bf16.msra.mxu0 0
      %433 = vmatprep.subr.bf16.mxu0 0
      %434 = vmatpush1.bf16.msra.mxu0 0
      %435 = vmatprep.subr.bf16.mxu0 0
      %436 = vmatpush1.bf16.msra.mxu0 0
      %437 = vmatprep.mubr.bf16.mxu0 0
      %438 = vmatmul.mubr.bf16.gmra.mrb[0].mxu0 %v382
      %v439 = vpop.f32.mrb[0].mxu0
      %v440 = vadd.f32 %v314, %v439
      %v441 = vpop.f32.mrb[0].mxu0
      %v442 = vpop.f32.mrb[0].mxu0
      %v443 = vadd.f32 %v314, %v442
      %v444 = vpop.f32.mrb[0].mxu0
      %445 = vmatprep.mubr.bf16.mxu0 0
      %446 = vmatmul.mubr.bf16.gmra.mrb[0].mxu0 %v385
      %v447 = vpop.f32.mrb[0].mxu0
      %v448 = vadd.f32 %v314, %v447
      %v449 = vpop.f32.mrb[0].mxu0
      %v450 = vpop.f32.mrb[0].mxu0
      %v451 = vadd.f32 %v314, %v450
      %v452 = vpop.f32.mrb[0].mxu0
      %453 = vmatprep.mubr.bf16.mxu0 0
      %454 = vmatmul.mubr.bf16.gmra.mrb[0].mxu0 %v388
      %v455 = vpop.f32.mrb[0].mxu0
      %v456 = vadd.f32 %v314, %v455
      %v457 = vpop.f32.mrb[0].mxu0
      %v458 = vpop.f32.mrb[0].mxu0
      %v459 = vadd.f32 %v314, %v458
      %v460 = vpop.f32.mrb[0].mxu0
      %461 = vmatprep.mubr.bf16.mxu0 0
      %462 = vmatmul.mubr.bf16.gmra.mrb[0].mxu0 %v391
      %v463 = vpop.f32.mrb[0].mxu0
      %v464 = vadd.f32 %v314, %v463
      %v465 = vpop.f32.mrb[0].mxu0
      %v466 = vpop.f32.mrb[0].mxu0
      %v467 = vadd.f32 %v314, %v466
      %v468 = vpop.f32.mrb[0].mxu0
      %469 = vmatprep.mubr.bf16.mxu0 0
      %470 = vmatmul.mubr.bf16.gmra.mrb[0].mxu0 %v394
      %v471 = vpop.f32.mrb[0].mxu0
      %v472 = vadd.f32 %v314, %v471
      %v473 = vpop.f32.mrb[0].mxu0
      %v474 = vpop.f32.mrb[0].mxu0
      %v475 = vadd.f32 %v314, %v474
      %v476 = vpop.f32.mrb[0].mxu0
      %477 = vmatprep.mubr.bf16.mxu0 0
      %478 = vmatmul.mubr.bf16.gmra.mrb[0].mxu0 %v397
      %v479 = vpop.f32.mrb[0].mxu0
      %v480 = vadd.f32 %v314, %v479
      %v481 = vpop.f32.mrb[0].mxu0
      %v482 = vpop.f32.mrb[0].mxu0
      %v483 = vadd.f32 %v314, %v482
      %v484 = vpop.f32.mrb[0].mxu0
      %485 = vmatprep.mubr.bf16.mxu0 0
      %486 = vmatmul.mubr.bf16.gmra.mrb[0].mxu0 %v400
      %v487 = vpop.f32.mrb[0].mxu0
      %v488 = vadd.f32 %v314, %v487
      %v489 = vpop.f32.mrb[0].mxu0
      %v490 = vpop.f32.mrb[0].mxu0
      %v491 = vadd.f32 %v314, %v490
      %v492 = vpop.f32.mrb[0].mxu0
      %493 = vmatprep.mubr.bf16.mxu0 0
      %494 = vmatmul.mubr.bf16.gmra.mrb[0].mxu0 %v403
      %v495 = vpop.f32.mrb[0].mxu0
      %v496 = vadd.f32 %v314, %v495
      %v497 = vpop.f32.mrb[0].mxu0
      %v498 = vpop.f32.mrb[0].mxu0
      %v499 = vadd.f32 %v314, %v498
      %v500 = vpop.f32.mrb[0].mxu0
      %501 = vdwg.mxu0
      %v502 = vmax.f32 %v440, 0.0
      %v503 = vmax.f32 %v443, 0.0
      %v504 = vmax.f32 %v448, 0.0
      %v505 = vmax.f32 %v451, 0.0
      %v506 = vmax.f32 %v456, 0.0
      %v507 = vmax.f32 %v459, 0.0
      %v508 = vmax.f32 %v464, 0.0
      %v509 = vmax.f32 %v467, 0.0
      %v510 = vmax.f32 %v472, 0.0
      %v511 = vmax.f32 %v475, 0.0
      %v512 = vmax.f32 %v480, 0.0
      %v513 = vmax.f32 %v483, 0.0
      %v514 = vmax.f32 %v488, 0.0
      %v515 = vmax.f32 %v491, 0.0
      %v516 = vmax.f32 %v496, 0.0
      %v517 = vmax.f32 %v499, 0.0
      %v518 = vpack.c.bf16 %v503, %v502
      %v519 = vpack.c.bf16 %v505, %v504
      %v520 = vpack.c.bf16 %v507, %v506
      %v521 = vpack.c.bf16 %v509, %v508
      %v522 = vpack.c.bf16 %v511, %v510
      %v523 = vpack.c.bf16 %v513, %v512
      %v524 = vpack.c.bf16 %v515, %v514
      %v525 = vpack.c.bf16 %v517, %v516
      %v526 = vld [vmem:[%s3] sm:$0xf]
      %v527 = vld [vmem:[%s3 + $0x4] sm:$0xf]
      %v528 = vld [vmem:[%s3 + $0x8] sm:$0xf]
      %v529 = vld [vmem:[%s3 + $0xc] sm:$0xf]
      %v530 = vld [vmem:[%s4] sm:$0x1]
      %v532 = vlaneseq
      %v533 = vshrl.u32 %v532, 7
      %v534 = vsub.s32 0, %v533
      %v535 = vrot.slane %v530, %v534
      %v541 = vunpack.c.l.b16 %v526
      %v542 = vunpack.c.l.b16 %v527
      %v543 = vunpack.c.l.b16 %v528
      %v544 = vunpack.c.l.b16 %v529
      %v545 = vpack.c.b16 %v542, %v541
      %v546 = vpack.c.b16 %v544, %v543
      %vm549 = vcmask 261120
      %v551 = vsel %vm549, %v518, 0
      %v554 = vsel %vm549, %v519, 0
      %v557 = vsel %vm549, %v520, 0
      %v560 = vsel %vm549, %v521, 0
      %v563 = vsel %vm549, %v522, 0
      %v566 = vsel %vm549, %v523, 0
      %v569 = vsel %vm549, %v524, 0
      %v572 = vsel %vm549, %v525, 0
      %574 = vmatprep.subr.bf16.mxu0 0
      %575 = vmatpush1.bf16.msra.mxu0 %v545
      %576 = vmatprep.subr.bf16.mxu0 0
      %577 = vmatpush1.bf16.msra.mxu0 %v546
      %578 = vmatprep.subr.bf16.mxu0 0
      %579 = vmatpush1.bf16.msra.mxu0 0
      %580 = vmatprep.subr.bf16.mxu0 0
      %581 = vmatpush1.bf16.msra.mxu0 0
      %582 = vmatprep.subr.bf16.mxu0 0
      %583 = vmatpush1.bf16.msra.mxu0 0
      %584 = vmatprep.subr.bf16.mxu0 0
      %585 = vmatpush1.bf16.msra.mxu0 0
      %586 = vmatprep.subr.bf16.mxu0 0
      %587 = vmatpush1.bf16.msra.mxu0 0
      %588 = vmatprep.subr.bf16.mxu0 0
      %589 = vmatpush1.bf16.msra.mxu0 0
      %590 = vmatprep.subr.bf16.mxu0 0
      %591 = vmatpush1.bf16.msra.mxu0 0
      %592 = vmatprep.subr.bf16.mxu0 0
      %593 = vmatpush1.bf16.msra.mxu0 0
      %594 = vmatprep.subr.bf16.mxu0 0
      %595 = vmatpush1.bf16.msra.mxu0 0
      %596 = vmatprep.subr.bf16.mxu0 0
      %597 = vmatpush1.bf16.msra.mxu0 0
      %598 = vmatprep.subr.bf16.mxu0 0
      %599 = vmatpush1.bf16.msra.mxu0 0
      %600 = vmatprep.subr.bf16.mxu0 0
      %601 = vmatpush1.bf16.msra.mxu0 0
      %602 = vmatprep.subr.bf16.mxu0 0
      %603 = vmatpush1.bf16.msra.mxu0 0
      %604 = vmatprep.subr.bf16.mxu0 0
      %605 = vmatpush1.bf16.msra.mxu0 0
      %606 = vmatprep.mubr.bf16.mxu0 0
      %607 = vmatmul.mubr.bf16.gmra.mrb[0].mxu0 %v551
      %v608 = vpop.f32.mrb[0].mxu0
      %v609 = vadd.f32 %v535, %v608
      %v610 = vpop.f32.mrb[0].mxu0
      %v611 = vpop.f32.mrb[0].mxu0
      %v612 = vadd.f32 %v535, %v611
      %v613 = vpop.f32.mrb[0].mxu0
      %614 = vmatprep.mubr.bf16.mxu0 0
      %615 = vmatmul.mubr.bf16.gmra.mrb[0].mxu0 %v554
      %v616 = vpop.f32.mrb[0].mxu0
      %v617 = vadd.f32 %v535, %v616
      %v618 = vpop.f32.mrb[0].mxu0
      %v619 = vpop.f32.mrb[0].mxu0
      %v620 = vadd.f32 %v535, %v619
      %v621 = vpop.f32.mrb[0].mxu0
      %622 = vmatprep.mubr.bf16.mxu0 0
      %623 = vmatmul.mubr.bf16.gmra.mrb[0].mxu0 %v557
      %v624 = vpop.f32.mrb[0].mxu0
      %v625 = vadd.f32 %v535, %v624
      %v626 = vpop.f32.mrb[0].mxu0
      %v627 = vpop.f32.mrb[0].mxu0
      %v628 = vadd.f32 %v535, %v627
      %v629 = vpop.f32.mrb[0].mxu0
      %630 = vmatprep.mubr.bf16.mxu0 0
      %631 = vmatmul.mubr.bf16.gmra.mrb[0].mxu0 %v560
      %v632 = vpop.f32.mrb[0].mxu0
      %v633 = vadd.f32 %v535, %v632
      %v634 = vpop.f32.mrb[0].mxu0
      %v635 = vpop.f32.mrb[0].mxu0
      %v636 = vadd.f32 %v535, %v635
      %v637 = vpop.f32.mrb[0].mxu0
      %638 = vmatprep.mubr.bf16.mxu0 0
      %639 = vmatmul.mubr.bf16.gmra.mrb[0].mxu0 %v563
      %v640 = vpop.f32.mrb[0].mxu0
      %v641 = vadd.f32 %v535, %v640
      %v642 = vpop.f32.mrb[0].mxu0
      %v643 = vpop.f32.mrb[0].mxu0
      %v644 = vadd.f32 %v535, %v643
      %v645 = vpop.f32.mrb[0].mxu0
      %646 = vmatprep.mubr.bf16.mxu0 0
      %647 = vmatmul.mubr.bf16.gmra.mrb[0].mxu0 %v566
      %v648 = vpop.f32.mrb[0].mxu0
      %v649 = vadd.f32 %v535, %v648
      %v650 = vpop.f32.mrb[0].mxu0
      %v651 = vpop.f32.mrb[0].mxu0
      %v652 = vadd.f32 %v535, %v651
      %v653 = vpop.f32.mrb[0].mxu0
      %654 = vmatprep.mubr.bf16.mxu0 0
      %655 = vmatmul.mubr.bf16.gmra.mrb[0].mxu0 %v569
      %v656 = vpop.f32.mrb[0].mxu0
      %v657 = vadd.f32 %v535, %v656
      %v658 = vpop.f32.mrb[0].mxu0
      %v659 = vpop.f32.mrb[0].mxu0
      %v660 = vadd.f32 %v535, %v659
      %v661 = vpop.f32.mrb[0].mxu0
      %662 = vmatprep.mubr.bf16.mxu0 0
      %663 = vmatmul.mubr.bf16.gmra.mrb[0].mxu0 %v572
      %v664 = vpop.f32.mrb[0].mxu0
      %v665 = vadd.f32 %v535, %v664
      %v666 = vpop.f32.mrb[0].mxu0
      %v667 = vpop.f32.mrb[0].mxu0
      %v668 = vadd.f32 %v535, %v667
      %v669 = vpop.f32.mrb[0].mxu0
      %670 = vdwg.mxu0
      %v671 = vmax.f32 %v609, 0.0
      %v672 = vmax.f32 %v612, 0.0
      %v673 = vmax.f32 %v617, 0.0
      %v674 = vmax.f32 %v620, 0.0
      %v675 = vmax.f32 %v625, 0.0
      %v676 = vmax.f32 %v628, 0.0
      %v677 = vmax.f32 %v633, 0.0
      %v678 = vmax.f32 %v636, 0.0
      %v679 = vmax.f32 %v641, 0.0
      %v680 = vmax.f32 %v644, 0.0
      %v681 = vmax.f32 %v649, 0.0
      %v682 = vmax.f32 %v652, 0.0
      %v683 = vmax.f32 %v657, 0.0
      %v684 = vmax.f32 %v660, 0.0
      %v685 = vmax.f32 %v665, 0.0
      %v686 = vmax.f32 %v668, 0.0
      %v687 = vld [vmem:[%s5] sm:$0x1]
      %v689 = vlaneseq
      %v690 = vshrl.u32 %v689, 7
      %v691 = vsub.s32 0, %v690
      %v692 = vrot.slane %v687, %v691
      %v694 = vmul.f32 %v671, %v692
      %v695 = vmul.f32 %v672, %v692
      %v696 = vmul.f32 %v673, %v692
      %v697 = vmul.f32 %v674, %v692
      %v698 = vmul.f32 %v675, %v692
      %v699 = vmul.f32 %v676, %v692
      %v700 = vmul.f32 %v677, %v692
      %v701 = vmul.f32 %v678, %v692
      %v702 = vmul.f32 %v679, %v692
      %v703 = vmul.f32 %v680, %v692
      %v704 = vmul.f32 %v681, %v692
      %v705 = vmul.f32 %v682, %v692
      %v706 = vmul.f32 %v683, %v692
      %v707 = vmul.f32 %v684, %v692
      %v708 = vmul.f32 %v685, %v692
      %v709 = vmul.f32 %v686, %v692
      %v710 = vsel %vm549, %v694, 0.0
      %711 = vadd.xlane.f32.xlu0 %v710
      %v712 = vpop.xlane.xlu0 %711
      %v713 = vsel %vm549, %v695, 0.0
      %714 = vadd.xlane.f32.xlu0 %v713
      %v715 = vpop.xlane.xlu0 %714
      %v716 = vsel %vm549, %v696, 0.0
      %717 = vadd.xlane.f32.xlu0 %v716
      %v718 = vpop.xlane.xlu0 %717
      %v719 = vsel %vm549, %v697, 0.0
      %720 = vadd.xlane.f32.xlu0 %v719
      %v721 = vpop.xlane.xlu0 %720
      %v722 = vsel %vm549, %v698, 0.0
      %723 = vadd.xlane.f32.xlu0 %v722
      %v724 = vpop.xlane.xlu0 %723
      %v725 = vsel %vm549, %v699, 0.0
      %726 = vadd.xlane.f32.xlu0 %v725
      %v727 = vpop.xlane.xlu0 %726
      %v728 = vsel %vm549, %v700, 0.0
      %729 = vadd.xlane.f32.xlu0 %v728
      %v730 = vpop.xlane.xlu0 %729
      %v731 = vsel %vm549, %v701, 0.0
      %732 = vadd.xlane.f32.xlu0 %v731
      %v733 = vpop.xlane.xlu0 %732
      %v734 = vsel %vm549, %v702, 0.0
      %735 = vadd.xlane.f32.xlu0 %v734
      %v736 = vpop.xlane.xlu0 %735
      %v737 = vsel %vm549, %v703, 0.0
      %738 = vadd.xlane.f32.xlu0 %v737
      %v739 = vpop.xlane.xlu0 %738
      %v740 = vsel %vm549, %v704, 0.0
      %741 = vadd.xlane.f32.xlu0 %v740
      %v742 = vpop.xlane.xlu0 %741
      %v743 = vsel %vm549, %v705, 0.0
      %744 = vadd.xlane.f32.xlu0 %v743
      %v745 = vpop.xlane.xlu0 %744
      %v746 = vsel %vm549, %v706, 0.0
      %747 = vadd.xlane.f32.xlu0 %v746
      %v748 = vpop.xlane.xlu0 %747
      %v749 = vsel %vm549, %v707, 0.0
      %750 = vadd.xlane.f32.xlu0 %v749
      %v751 = vpop.xlane.xlu0 %750
      %v752 = vsel %vm549, %v708, 0.0
      %753 = vadd.xlane.f32.xlu0 %v752
      %v754 = vpop.xlane.xlu0 %753
      %v755 = vsel %vm549, %v709, 0.0
      %756 = vadd.xlane.f32.xlu0 %v755
      %v757 = vpop.xlane.xlu0 %756
      %v758 = vld [vmem:[#allocation2] sm:$0x1]
      %v760 = vlaneseq
      %v761 = vshrl.u32 %v760, 7
      %v762 = vsub.s32 0, %v761
      %v763 = vrot.slane %v758, %v762
      %v765 = vadd.f32 %v712, %v763
      %v766 = vadd.f32 %v715, %v763
      %v767 = vadd.f32 %v718, %v763
      %v768 = vadd.f32 %v721, %v763
      %v769 = vadd.f32 %v724, %v763
      %v770 = vadd.f32 %v727, %v763
      %v771 = vadd.f32 %v730, %v763
      %v772 = vadd.f32 %v733, %v763
      %v773 = vadd.f32 %v736, %v763
      %v774 = vadd.f32 %v739, %v763
      %v775 = vadd.f32 %v742, %v763
      %v776 = vadd.f32 %v745, %v763
      %v777 = vadd.f32 %v748, %v763
      %v778 = vadd.f32 %v751, %v763
      %v779 = vadd.f32 %v754, %v763
      %v780 = vadd.f32 %v757, %v763
      %v781 = vxor.u32 %v765, 2147483648
      %v782 = vxor.u32 %v766, 2147483648
      %v783 = vxor.u32 %v767, 2147483648
      %v784 = vxor.u32 %v768, 2147483648
      %v785 = vxor.u32 %v769, 2147483648
      %v786 = vxor.u32 %v770, 2147483648
      %v787 = vxor.u32 %v771, 2147483648
      %v788 = vxor.u32 %v772, 2147483648
      %v789 = vxor.u32 %v773, 2147483648
      %v790 = vxor.u32 %v774, 2147483648
      %v791 = vxor.u32 %v775, 2147483648
      %v792 = vxor.u32 %v776, 2147483648
      %v793 = vxor.u32 %v777, 2147483648
      %v794 = vxor.u32 %v778, 2147483648
      %v795 = vxor.u32 %v779, 2147483648
      %v796 = vxor.u32 %v780, 2147483648
      %v797 = vmul.f32 %v781, 1.442695
      %v798 = vpow.pop %v797
      %v799 = vmul.f32 %v782, 1.442695
      %v800 = vpow.pop %v799
      %v801 = vmul.f32 %v783, 1.442695
      %v802 = vpow.pop %v801
      %v803 = vmul.f32 %v784, 1.442695
      %v804 = vpow.pop %v803
      %v805 = vmul.f32 %v785, 1.442695
      %v806 = vpow.pop %v805
      %v807 = vmul.f32 %v786, 1.442695
      %v808 = vpow.pop %v807
      %v809 = vmul.f32 %v787, 1.442695
      %v810 = vpow.pop %v809
      %v811 = vmul.f32 %v788, 1.442695
      %v812 = vpow.pop %v811
      %v813 = vmul.f32 %v789, 1.442695
      %v814 = vpow.pop %v813
      %v815 = vmul.f32 %v790, 1.442695
      %v816 = vpow.pop %v815
      %v817 = vmul.f32 %v791, 1.442695
      %v818 = vpow.pop %v817
      %v819 = vmul.f32 %v792, 1.442695
      %v820 = vpow.pop %v819
      %v821 = vmul.f32 %v793, 1.442695
      %v822 = vpow.pop %v821
      %v823 = vmul.f32 %v794, 1.442695
      %v824 = vpow.pop %v823
      %v825 = vmul.f32 %v795, 1.442695
      %v826 = vpow.pop %v825
      %v827 = vmul.f32 %v796, 1.442695
      %v828 = vpow.pop %v827
      %v829 = vadd.f32 %v798, 1.0
      %v830 = vadd.f32 %v800, 1.0
      %v831 = vadd.f32 %v802, 1.0
      %v832 = vadd.f32 %v804, 1.0
      %v833 = vadd.f32 %v806, 1.0
      %v834 = vadd.f32 %v808, 1.0
      %v835 = vadd.f32 %v810, 1.0
      %v836 = vadd.f32 %v812, 1.0
      %v837 = vadd.f32 %v814, 1.0
      %v838 = vadd.f32 %v816, 1.0
      %v839 = vadd.f32 %v818, 1.0
      %v840 = vadd.f32 %v820, 1.0
      %v841 = vadd.f32 %v822, 1.0
      %v842 = vadd.f32 %v824, 1.0
      %v843 = vadd.f32 %v826, 1.0
      %v844 = vadd.f32 %v828, 1.0
      %v845 = vrcp.pop %v829
      %v846 = vmul.f32 1.0, %v845
      %v847 = vrcp.pop %v830
      %v848 = vmul.f32 1.0, %v847
      %v849 = vrcp.pop %v831
      %v850 = vmul.f32 1.0, %v849
      %v851 = vrcp.pop %v832
      %v852 = vmul.f32 1.0, %v851
      %v853 = vrcp.pop %v833
      %v854 = vmul.f32 1.0, %v853
      %v855 = vrcp.pop %v834
      %v856 = vmul.f32 1.0, %v855
      %v857 = vrcp.pop %v835
      %v858 = vmul.f32 1.0, %v857
      %v859 = vrcp.pop %v836
      %v860 = vmul.f32 1.0, %v859
      %v861 = vrcp.pop %v837
      %v862 = vmul.f32 1.0, %v861
      %v863 = vrcp.pop %v838
      %v864 = vmul.f32 1.0, %v863
      %v865 = vrcp.pop %v839
      %v866 = vmul.f32 1.0, %v865
      %v867 = vrcp.pop %v840
      %v868 = vmul.f32 1.0, %v867
      %v869 = vrcp.pop %v841
      %v870 = vmul.f32 1.0, %v869
      %v871 = vrcp.pop %v842
      %v872 = vmul.f32 1.0, %v871
      %v873 = vrcp.pop %v843
      %v874 = vmul.f32 1.0, %v873
      %v875 = vrcp.pop %v844
      %v876 = vmul.f32 1.0, %v875
      %vm877 = vcmask 7168
      %878 = vst.msk [vmem:[%s282] sm:$0xff] %vm877, %v846
      %879 = vst.msk [vmem:[%s282 + $0x8] sm:$0xff] %vm877, %v848
      %880 = vst.msk [vmem:[%s282 + $0x10] sm:$0xff] %vm877, %v850
      %881 = vst.msk [vmem:[%s282 + $0x18] sm:$0xff] %vm877, %v852
      %882 = vst.msk [vmem:[%s282 + $0x20] sm:$0xff] %vm877, %v854
      %883 = vst.msk [vmem:[%s282 + $0x28] sm:$0xff] %vm877, %v856
      %884 = vst.msk [vmem:[%s282 + $0x30] sm:$0xff] %vm877, %v858
      %885 = vst.msk [vmem:[%s282 + $0x38] sm:$0xff] %vm877, %v860
      %886 = vst.msk [vmem:[%s282 + $0x40] sm:$0xff] %vm877, %v862
      %887 = vst.msk [vmem:[%s282 + $0x48] sm:$0xff] %vm877, %v864
      %888 = vst.msk [vmem:[%s282 + $0x50] sm:$0xff] %vm877, %v866
      %889 = vst.msk [vmem:[%s282 + $0x58] sm:$0xff] %vm877, %v868
      %890 = vst.msk [vmem:[%s282 + $0x60] sm:$0xff] %vm877, %v870
      %891 = vst.msk [vmem:[%s282 + $0x68] sm:$0xff] %vm877, %v872
      %892 = vst.msk [vmem:[%s282 + $0x70] sm:$0xff] %vm877, %v874
      %893 = vst.msk [vmem:[%s282 + $0x78] sm:$0xff] %vm877, %v876
      %s894 = smul.u32 16, %s20
      %p895 = scmp.lt.s32.totalorder %s894, 63
      %s896 = scalar_select %p895, %s894, 63
      %s897 = smul.addr %s896, 8
      %s898 = scalar_lea.vmem %s7, %s897
      // Predicated region
      $region49: #{tpu_custom_call.1} parent=47 // pred_check
        %p899 = pneg %p190
      $region50: #{tpu_custom_call.1} parent=47 // pred_check_branch
        %901 = sbr.rel (%p899) target = $region52
      $region51: #{tpu_custom_call.1} parent=47 // pred_region
        %s902 = smul.u32 16, %s20
      $region52: #{tpu_custom_call.1} parent=47 // pred_fallthru
        _
    $region48: #{tpu_custom_call.1} parent=5 // pred_fallthru
      _
    %p903 = scmp.le.s32.totalorder 2, %s15
    // Predicated region
    $region53: #{tpu_custom_call.1} parent=5 // pred_check
      %p904 = pneg %p903
    $region54: #{tpu_custom_call.1} parent=5 // pred_check_branch
      %906 = sbr.rel (%p904) target = $region56
    $region55: #{tpu_custom_call.1} parent=5 // pred_region
      %s907 = ssub.s32 %s15, 2
      // Predicated region
      $region57: #{tpu_custom_call.1} parent=55 // pred_check
        %p908 = pneg %p196
      $region58: #{tpu_custom_call.1} parent=55 // pred_check_branch
        %910 = sbr.rel (%p908) target = $region60
      $region59: #{tpu_custom_call.1} parent=55 // pred_region
        %s911 = smul.u32 16, %s21
        %p912 = scmp.lt.s32.totalorder %s911, 63
        %s913 = scalar_select %p912, %s911, 63
        %s914 = smul.addr %s913, 8
        %s915 = scalar_lea.vmem %s7, %s914
      $region60: #{tpu_custom_call.1} parent=55 // pred_fallthru
        _
    $region56: #{tpu_custom_call.1} parent=5 // pred_fallthru
      _
  $region6: #{tpu_custom_call.1} parent=0 // loop_footer
    %s19 = sadd.s32 1, %s15
  $region7: #{tpu_custom_call.1} parent=0 // loop_footer_branch
    %14 = sbr.rel target = $region3
  $region8: #{tpu_custom_call.1} parent=0 // loop_exit
    _

</llo_original>
